<compile_context>
chip_gen: v7x
topology: tpu7x:2x2x1
jax: 0.10.0
libtpu: 0.0.40
codegen_flags: <defaults>
</compile_context>

<pallas_src>
import math

import jax
import jax.numpy as jnp
from jax.experimental import pallas as pl
from jax.experimental.pallas import tpu as pltpu

_SQRT_2_OVER_PI = math.sqrt(2.0 / math.pi)


def _gelu_tanh(x):
    # matches torch.nn.functional.gelu(x, approximate='tanh')
    return 0.5 * x * (1.0 + jnp.tanh(_SQRT_2_OVER_PI * (x + 0.044715 * x * x * x)))


def _round_up(n, m):
    return ((n + m - 1) // m) * m


def _cdiv(a, b):
    return (a + b - 1) // b


# --------------------------------------------------------------------------
# VMEM budgeting / tile selection
# --------------------------------------------------------------------------
def _vmem_capacity_bytes():
    """Per-core VMEM capacity; conservative 64 MiB (v7x) fallback if unknown."""
    try:
        info = pltpu.get_tpu_info()
        cap = int(getattr(info, "vmem_capacity_bytes", 0) or 0)
        if cap > 0:
            return cap
    except Exception:
        pass
    return 64 << 20


def _vmem_budget_bytes(cap):
    # Headroom for Mosaic internal scratch / estimate error:
    #   128 MiB chips (v5e/v6e) -> ~108 MiB usable, 64 MiB (v7x) -> ~52 MiB.
    return max(32 << 20, min(int(0.85 * cap), cap - (12 << 20)))


def _vmem_bytes(tm, te, D, W_pad, in_bpe, out_bpe, with_scratch):
    b = 2 * tm * D * in_bpe             # x tiles (double-buffered)
    b += 2 * D * (2 * te) * in_bpe      # fused up-weight tiles
    b += 2 * 8 * (2 * te) * 4           # up-bias tiles (sublane-padded, f32)
    b += 2 * te * W_pad * in_bpe        # down-weight tiles
    b += 2 * 8 * W_pad * 4              # down-bias tiles
    b += 2 * tm * W_pad * out_bpe       # output tiles (double-buffered)
    if with_scratch:
        b += tm * W_pad * 4             # f32 accumulator scratch
    b += tm * (2 * te) * 4              # f32 `up` temporary
    b += tm * te * 4                    # f32 `act` temporary
    b += 2 << 20                        # Mosaic internal scratch
    return b


def _choose_te(D, E, W, in_bpe, budget, tm_ref=512):
    """Pick the largest lane-aligned E tile that fits the per-chip budget."""
    W_pad = _round_up(W, 128)
    e_cap = _round_up(E, 128)
    for te in (512, 256, 128):
        te = min(te, e_cap)
        if _vmem_bytes(tm_ref, te, D, W_pad, in_bpe, 4, True) <= budget:
            return te
    return min(128, e_cap)


def _choose_tm(M, te, D, W_pad, in_bpe, out_bpe, budget, with_scratch):
    """Biggest row tile that fits VMEM, then ensure >=2 row tiles (megacore)."""
    tm_full = max(16, min(1024, _round_up(M, 16)))
    cands = [c for c in (1024, 512, 256, 128, 64, 32, 16) if c <= tm_full] or [16]
    tm = cands[-1]
    for c in cands:
        if _vmem_bytes(c, te, D, W_pad, in_bpe, out_bpe, with_scratch) <= budget:
            tm = c
            break
    # keep both v7x TensorCores busy under dimension_semantics=("parallel", ...)
    while tm > 128 and _cdiv(M, tm) < 2:
        tm //= 2
    return max(16, tm)


# --------------------------------------------------------------------------
# One-time weight preparation (hoisted out of the per-call path)
# --------------------------------------------------------------------------
def prepare_mlp_params(w_up, b_up, w_down, b_down, *, mxu_dtype=jnp.bfloat16, te=None):
    """Re-lay-out MLPBlock weights once for the fused kernel.

    w_up   : (2, D, E)      Einsum weight ('...td,cdD->c...tD')
    b_up   : reshapable to (2, E)
    w_down : (W, E)         nn.Linear weight
    b_down : (W,)
    """
    _, D, E = w_up.shape
    W = w_down.shape[0]

    in_bpe = jnp.dtype(mxu_dtype).itemsize
    budget = _vmem_budget_bytes(_vmem_capacity_bytes())
    if te is None:
        te = _choose_te(D, E, W, in_bpe, budget)
    te = min(_round_up(te, 128), _round_up(E, 128))
    E_pad = _round_up(E, te)
    n_e = E_pad // te
    W_pad = _round_up(W, 128)

    # Fused up-weight, block-interleaved per E-tile:
    # column index = e*(2*te) + gate*te + j  ->  block e = [gate0 tile e | gate1 tile e].
    wu = jnp.transpose(w_up, (1, 0, 2)).astype(mxu_dtype)            # (D, 2, E)
    wu = jnp.pad(wu, ((0, 0), (0, 0), (0, E_pad - E)))
    wu = wu.reshape(D, 2, n_e, te).transpose(0, 2, 1, 3).reshape(D, 2 * E_pad)

    bu = jnp.reshape(b_up, (2, E)).astype(jnp.float32)
    bu = jnp.pad(bu, ((0, 0), (0, E_pad - E)))
    bu = bu.reshape(2, n_e, te).transpose(1, 0, 2).reshape(1, 2 * E_pad)

    wd = jnp.transpose(w_down, (1, 0)).astype(mxu_dtype)             # (E, W)
    wd = jnp.pad(wd, ((0, E_pad - E), (0, W_pad - W)))

    bd = jnp.pad(b_down.astype(jnp.float32), (0, W_pad - W)).reshape(1, W_pad)

    return {
        "wu": wu, "bu": bu, "wd": wd, "bd": bd,
        "D": D, "E": E, "W": W,
        "te": te, "n_e": n_e, "E_pad": E_pad, "W_pad": W_pad,
        "mxu_dtype": mxu_dtype,
    }


# --------------------------------------------------------------------------
# Kernel
# --------------------------------------------------------------------------
def _mlp_kernel(x_ref, wu_ref, bu_ref, wd_ref, bd_ref, out_ref, *scratch):
    """One (row-tile i, expanded-tile e) grid step.

    x_ref  : (tm, D)      MXU dtype (bf16 by default)
    wu_ref : (D, 2*te)    fused up-weights for this E-tile ([gate0 | gate1])
    bu_ref : (1, 2*te)    fused up-bias (f32)
    wd_ref : (te, W_pad)  down-weight rows for this E-tile
    bd_ref : (1, W_pad)   down bias (f32)
    out_ref: (tm, W_pad)  resident across e (same block index)
    scratch: optional (tm, W_pad) f32 accumulator (only for non-f32 outputs)
    """
    acc_ref = scratch[0] if scratch else out_ref   # f32 in either case
    e = pl.program_id(1)
    te = wd_ref.shape[0]

    @pl.when(e == 0)
    def _init():
        # fold the down-projection bias into the accumulator init
        acc_ref[...] = jnp.broadcast_to(bd_ref[...], acc_ref.shape)

    # Fused dual up-projection: one MXU pass yields both gates for this E-tile,
    # f32 accumulation via preferred_element_type (operands stay in MXU dtype).
    up = jnp.dot(x_ref[...], wu_ref[...], preferred_element_type=jnp.float32)
    up = up + bu_ref[...]                          # (tm, 2*te) f32
    act = _gelu_tanh(up[:, :te]) * up[:, te:]      # gated tanh-GELU, f32

    # Down-projection partial sum; `acc += dot` form maps onto v7x MRB accumulate.
    acc_ref[...] += jnp.dot(act.astype(wd_ref.dtype), wd_ref[...],
                            preferred_element_type=jnp.float32)

    if scratch:  # non-f32 output: cast once on the final reduction step
        @pl.when(e == pl.num_programs(1) - 1)
        def _finalize():
            out_ref[...] = acc_ref[...].astype(out_ref.dtype)


# --------------------------------------------------------------------------
# Forward wrapper
# --------------------------------------------------------------------------
def mlp_block(x, params, *, tm=None):
    """MLPBlock forward using pre-prepared params (see prepare_mlp_params)."""
    B, T, D = x.shape
    assert D == params["D"], "width mismatch vs prepared params"
    out_dtype = x.dtype
    mxu_dtype = params["mxu_dtype"]
    te, n_e = params["te"], params["n_e"]
    W, W_pad = params["W"], params["W_pad"]
    M = B * T

    in_bpe = jnp.dtype(mxu_dtype).itemsize
    out_bpe = jnp.dtype(out_dtype).itemsize
    use_scratch = jnp.dtype(out_dtype) != jnp.dtype(jnp.float32)

    cap = _vmem_capacity_bytes()
    budget = _vmem_budget_bytes(cap)
    if tm is None:
        tm = _choose_tm(M, te, D, W_pad, in_bpe, out_bpe, budget, use_scratch)
    tm = max(16, _round_up(tm, 16))
    M_pad = _round_up(M, tm)

    x2 = x.reshape(M, D).astype(mxu_dtype)
    if M_pad != M:
        x2 = jnp.pad(x2, ((0, M_pad - M), (0, 0)))

    vmem_bytes = _vmem_bytes(tm, te, D, W_pad, in_bpe, out_bpe, use_scratch) + (4 << 20)
    vmem_bytes = int(min(max(vmem_bytes, 32 << 20), cap - (8 << 20)))

    scratch_shapes = [pltpu.VMEM((tm, W_pad), jnp.float32)] if use_scratch else []

    out = pl.pallas_call(
        _mlp_kernel,
        out_shape=jax.ShapeDtypeStruct((M_pad, W_pad), out_dtype),
        grid=(M_pad // tm, n_e),                       # reduction axis (E) last
        in_specs=[
            pl.BlockSpec((tm, D), lambda i, e: (i, 0)),
            pl.BlockSpec((D, 2 * te), lambda i, e: (0, e)),
            pl.BlockSpec((1, 2 * te), lambda i, e: (0, e)),
            pl.BlockSpec((te, W_pad), lambda i, e: (e, 0)),
            pl.BlockSpec((1, W_pad), lambda i, e: (0, 0)),
        ],
        out_specs=pl.BlockSpec((tm, W_pad), lambda i, e: (i, 0)),
        scratch_shapes=scratch_shapes,
        compiler_params=pltpu.CompilerParams(
            dimension_semantics=("parallel", "arbitrary"),
            vmem_limit_bytes=vmem_bytes),
    )(x2, params["wu"], params["bu"], params["wd"], params["bd"])

    return out[:M, :W].reshape(B, T, W)


# --------------------------------------------------------------------------
# Reference + init (matching the PyTorch module)
# --------------------------------------------------------------------------
def init_params(key, width, expanded_width, final_w_init_variance_scale=1.0,
                dtype=jnp.float32):
    k_up, k_down = jax.random.split(key)
    # Einsum.reset_parameters: std = sqrt(scale / w.shape[1]) = sqrt(1/width)
    std_up = math.sqrt(1.0 / width)
    w_up = std_up * jax.random.normal(k_up, (2, width, expanded_width), dtype=dtype)
    b_up = jnp.zeros((2, 1, 1, expanded_width), dtype=dtype)
    # ffw_down: Linear(expanded_width, width), std = sqrt(final_scale / expanded_width)
    std_down = math.sqrt(final_w_init_variance_scale / expanded_width)
    w_down = std_down * jax.random.normal(k_down, (width, expanded_width), dtype=dtype)
    b_down = jnp.zeros((width,), dtype=dtype)
    return w_up, b_up, w_down, b_down


def mlp_block_ref(x, w_up, b_up, w_down, b_down):
    # pure-JAX f32 reference of the torch forward
    out = jnp.einsum('btd,cdD->cbtD', x, w_up) + b_up          # (2, B, T, E)
    act = _gelu_tanh(out[0]) * out[1]
    return jnp.einsum('btE,WE->btW', act, w_down) + b_down


if __name__ == "__main__":
    width = 32
    expanded_width = 128
    B, T = 2, 8

    key = jax.random.PRNGKey(0)
    k_x, k_p = jax.random.split(key)
    x = jax.random.normal(k_x, (B, T, width), dtype=jnp.float32)
    w_up, b_up, w_down, b_down = init_params(k_p, width, expanded_width)

    # one-time weight re-layout (hoisted out of the per-call path)
    params = prepare_mlp_params(w_up, b_up, w_down, b_down, mxu_dtype=jnp.bfloat16)

    y = mlp_block(x, params)
    y = jax.block_until_ready(y)

    y_ref = mlp_block_ref(x, w_up, b_up, w_down, b_down)
    assert y.shape == (B, T, width)
    # bf16 MXU operands with f32 accumulation: allow ~a few % deviation vs the
    # pure-f32 reference (documented precision trade-off from the perf review).
    assert jnp.allclose(y, y_ref, atol=5e-2, rtol=5e-2), "mismatch vs reference"

    print("KERNEL_OK")
</pallas_src>

<mosaic_0001>
module attributes {stable_mosaic.version = 11 : i64} {
  func.func @_mlp_kernel(%arg0: i32, %arg1: i32, %arg2: memref<16x32xbf16, #tpu.memory_space<vmem>>, %arg3: memref<32x256xbf16, #tpu.memory_space<vmem>>, %arg4: memref<1x256xf32, #tpu.memory_space<vmem>>, %arg5: memref<128x128xbf16, #tpu.memory_space<vmem>>, %arg6: memref<1x128xf32, #tpu.memory_space<vmem>>, %arg7: memref<16x128xf32, #tpu.memory_space<vmem>>) attributes {dimension_semantics = [#tpu.dimension_semantics<parallel>, #tpu.dimension_semantics<arbitrary>], iteration_bounds = array<i64: 1, 1>, scalar_prefetch = 0 : i64, scratch_operands = 0 : i64, tpu.core_type = #tpu.core_type<tc>, window_params = [{transform_indices = @transform_0, window_bounds = array<i64: 16, 32>}, {transform_indices = @transform_1, window_bounds = array<i64: 32, 256>}, {transform_indices = @transform_2, window_bounds = array<i64: 1, 256>}, {transform_indices = @transform_3, window_bounds = array<i64: 128, 128>}, {pipeline_mode = #tpu.pipeline_mode<synchronous>, transform_indices = @transform_4, window_bounds = array<i64: 1, 128>}, {transform_indices = @transform_5, window_bounds = array<i64: 16, 128>}]} {
    %c0_i32 = arith.constant 0 : i32
    %0 = arith.cmpi eq, %arg1, %c0_i32 : i32
    %1 = arith.extui %0 : i1 to i32
    %c0_i32_0 = arith.constant 0 : i32
    %2 = arith.cmpi ne, %1, %c0_i32_0 : i32
    scf.if %2 {
      %c0_17 = arith.constant 0 : index
      %c0_18 = arith.constant 0 : index
      %31 = vector.load %arg6[%c0_17, %c0_18] : memref<1x128xf32, #tpu.memory_space<vmem>>, vector<1x128xf32>
      %32 = vector.shape_cast %31 : vector<1x128xf32> to vector<1x128xf32>
      %33 = vector.broadcast %32 : vector<1x128xf32> to vector<16x128xf32>
      %c0_19 = arith.constant 0 : index
      %c0_20 = arith.constant 0 : index
      %34 = vector.load %arg7[%c0_19, %c0_20] : memref<16x128xf32, #tpu.memory_space<vmem>>, vector<16x128xf32>
      tpu.vector_store %arg7[%c0_19, %c0_20], %33 {strides = array<i32>} : memref<16x128xf32, #tpu.memory_space<vmem>>, vector<16x128xf32>,
    } else {
    }
    %c0 = arith.constant 0 : index
    %c0_1 = arith.constant 0 : index
    %3 = vector.load %arg2[%c0, %c0_1] : memref<16x32xbf16, #tpu.memory_space<vmem>>, vector<16x32xbf16>
    %c0_2 = arith.constant 0 : index
    %c0_3 = arith.constant 0 : index
    %4 = vector.load %arg3[%c0_2, %c0_3] : memref<32x256xbf16, #tpu.memory_space<vmem>>, vector<32x256xbf16>
    %cst = arith.constant dense<0.000000e+00> : vector<16x256xf32>
    %5 = tpu.matmul %3, %4, %cst {dimension_numbers = #tpu.dot_dimension_numbers<[1], [0], [0], [1], [0, 0, 1, 1], [], []>} : vector<16x32xbf16>, vector<32x256xbf16>, vector<16x256xf32> -> vector<16x256xf32>
    %c0_4 = arith.constant 0 : index
    %c0_5 = arith.constant 0 : index
    %6 = vector.load %arg4[%c0_4, %c0_5] : memref<1x256xf32, #tpu.memory_space<vmem>>, vector<1x256xf32>
    %7 = vector.broadcast %6 : vector<1x256xf32> to vector<16x256xf32>
    %8 = arith.addf %5, %7 : vector<16x256xf32>
    %9 = vector.extract_strided_slice %8 {offsets = [0, 0], sizes = [16, 128], strides = [1, 1]} : vector<16x256xf32> to vector<16x128xf32>
    %cst_6 = arith.constant 5.000000e-01 : f32
    %10 = vector.broadcast %cst_6 : f32 to vector<16x128xf32>
    %11 = arith.mulf %10, %9 : vector<16x128xf32>
    %cst_7 = arith.constant 4.471500e-02 : f32
    %12 = vector.broadcast %cst_7 : f32 to vector<16x128xf32>
    %13 = arith.mulf %12, %9 : vector<16x128xf32>
    %14 = arith.mulf %13, %9 : vector<16x128xf32>
    %15 = arith.mulf %14, %9 : vector<16x128xf32>
    %16 = arith.addf %9, %15 : vector<16x128xf32>
    %cst_8 = arith.constant 0.797884583 : f32
    %17 = vector.broadcast %cst_8 : f32 to vector<16x128xf32>
    %18 = arith.mulf %17, %16 : vector<16x128xf32>
    %19 = math.tanh %18 : vector<16x128xf32>
    %cst_9 = arith.constant 1.000000e+00 : f32
    %20 = vector.broadcast %cst_9 : f32 to vector<16x128xf32>
    %21 = arith.addf %20, %19 : vector<16x128xf32>
    %22 = arith.mulf %11, %21 : vector<16x128xf32>
    %23 = vector.extract_strided_slice %8 {offsets = [0, 128], sizes = [16, 128], strides = [1, 1]} : vector<16x256xf32> to vector<16x128xf32>
    %24 = arith.mulf %22, %23 : vector<16x128xf32>
    %c0_10 = arith.constant 0 : index
    %c0_11 = arith.constant 0 : index
    %25 = vector.load %arg7[%c0_10, %c0_11] : memref<16x128xf32, #tpu.memory_space<vmem>>, vector<16x128xf32>
    %26 = arith.truncf %24 : vector<16x128xf32> to vector<16x128xbf16>
    %c0_12 = arith.constant 0 : index
    %c0_13 = arith.constant 0 : index
    %27 = vector.load %arg5[%c0_12, %c0_13] : memref<128x128xbf16, #tpu.memory_space<vmem>>, vector<128x128xbf16>
    %cst_14 = arith.constant dense<0.000000e+00> : vector<16x128xf32>
    %28 = tpu.matmul %26, %27, %cst_14 {dimension_numbers = #tpu.dot_dimension_numbers<[1], [0], [0], [1], [0, 0, 1, 1], [], []>} : vector<16x128xbf16>, vector<128x128xbf16>, vector<16x128xf32> -> vector<16x128xf32>
    %29 = arith.addf %25, %28 : vector<16x128xf32>
    %c0_15 = arith.constant 0 : index
    %c0_16 = arith.constant 0 : index
    %30 = vector.load %arg7[%c0_15, %c0_16] : memref<16x128xf32, #tpu.memory_space<vmem>>, vector<16x128xf32>
    tpu.vector_store %arg7[%c0_15, %c0_16], %29 {strides = array<i32>} : memref<16x128xf32, #tpu.memory_space<vmem>>, vector<16x128xf32>,
    return
  }
  func.func @transform_0(%arg0: i32, %arg1: i32) -> (i32, i32) {
    %c0_i32 = arith.constant 0 : i32
    %c0_i32_0 = arith.constant 0 : i32
    return %arg0, %c0_i32 : i32, i32
  }
  func.func @transform_1(%arg0: i32, %arg1: i32) -> (i32, i32) {
    %c0_i32 = arith.constant 0 : i32
    %c0_i32_0 = arith.constant 0 : i32
    return %c0_i32, %arg1 : i32, i32
  }
  func.func @transform_2(%arg0: i32, %arg1: i32) -> (i32, i32) {
    %c0_i32 = arith.constant 0 : i32
    %c0_i32_0 = arith.constant 0 : i32
    return %c0_i32, %arg1 : i32, i32
  }
  func.func @transform_3(%arg0: i32, %arg1: i32) -> (i32, i32) {
    %c0_i32 = arith.constant 0 : i32
    %c0_i32_0 = arith.constant 0 : i32
    return %arg1, %c0_i32 : i32, i32
  }
  func.func @transform_4(%arg0: i32, %arg1: i32) -> (i32, i32) {
    %c0_i32 = arith.constant 0 : i32
    %c0_i32_0 = arith.constant 0 : i32
    %c0_i32_1 = arith.constant 0 : i32
    return %c0_i32, %c0_i32_0 : i32, i32
  }
  func.func @transform_5(%arg0: i32, %arg1: i32) -> (i32, i32) {
    %c0_i32 = arith.constant 0 : i32
    %c0_i32_0 = arith.constant 0 : i32
    return %arg0, %c0_i32 : i32, i32
  }
}

</mosaic_0001>

<llo_original>
// kernel: tpu_custom_call.1
$region0: #{tpu_custom_call.1}
  #allocation0 [shape = 'u32[]', space=smem, size = 0x4, offset = 0x4, fixed_abs, tag = 'smem constant byte address 0x4 - core index']
  #allocation1 [shape = 'u32[144,128]{1,0:T(1,128)}', space=vmem, size = 0x12000, scoped, tag = 'internal scratch']
  %s0 = inlined_call_operand.hbm [shape: bf16[16,32], index: 0, kind: input, shape index: {}]
  %s1 = inlined_call_operand.hbm [shape: bf16[32,256], index: 1, kind: input, shape index: {}]
  %s2 = inlined_call_operand.vmem [shape: f32[1,256], index: 2, kind: input, shape index: {}]
  %s3 = inlined_call_operand.hbm [shape: bf16[128,128], index: 3, kind: input, shape index: {}]
  %s4 = inlined_call_operand.vmem [shape: f32[1,128], index: 4, kind: input, shape index: {}]
  %s5 = inlined_call_operand.hbm [shape: f32[16,128], index: 5, kind: output, shape index: {}]
  %s6 = sld [smem:[#allocation0]]
  $region46: #{tpu_custom_call.1} parent=0
    _
  %s8 = ssub.s32 1, %s6
  %s9 = scalar_select 0, %s8, %s6
  $region1: #{tpu_custom_call.1} parent=0
    #allocation2 [shape = 'u8[4096]{0}', space=vmem, size = 0x1000, scoped, tag = 'input window, operand 0, single buffered']
    #allocation3 [shape = 's32[1]{0}', space=sflag, size = 0x4, scoped, tag = 'scoped memory for tpu_custom_call.1']
    #allocation4 [shape = 's32[1]{0}', space=sflag, size = 0x4, scoped, tag = 'scoped memory for tpu_custom_call.1']
    #allocation5 [shape = 'u8[16384]{0}', space=vmem, size = 0x4000, scoped, tag = 'input window, operand 1, single buffered']
    #allocation6 [shape = 's32[1]{0}', space=sflag, size = 0x4, scoped, tag = 'scoped memory for tpu_custom_call.1']
    #allocation7 [shape = 'u8[32768]{0}', space=vmem, size = 0x8000, scoped, tag = 'input window, operand 3, single buffered']
    #allocation8 [shape = 'u8[8192]{0}', space=vmem, size = 0x2000, scoped, tag = 'output window, operand 0, single buffered']
    %10 = vsyncpa [#allocation3], 0
    %11 = vsyncpa [#allocation6], 0
    %12 = vsyncpa [#allocation4], 0
    // Predicated region
    $region2: #{tpu_custom_call.1} parent=1 // pred_check
      _
    $region3: #{tpu_custom_call.1} parent=1 // pred_check_branch
      %14 = sbr.rel (0) target = $region5
    $region4: #{tpu_custom_call.1} parent=1 // pred_region
      %s16 = ssub.s32 128, 128
      %17 = vsyncadd [#allocation3], %s16
      %s18 = sshll.u32 [#allocation2], 4
      %s19 = int_to_ptr.vmem [resolvable:$true] %s18
      %24 = dma.hbm_to_vmem [thread:$0]  %s0, 128, %s19, [#allocation3], 64, 64, 4
    $region5: #{tpu_custom_call.1} parent=1 // pred_fallthru
      _
    // Predicated region
    $region6: #{tpu_custom_call.1} parent=1 // pred_check
      _
    $region7: #{tpu_custom_call.1} parent=1 // pred_check_branch
      %26 = sbr.rel (0) target = $region9
    $region8: #{tpu_custom_call.1} parent=1 // pred_region
      %s28 = ssub.s32 512, 512
      %29 = vsyncadd [#allocation6], %s28
      %s30 = sshll.u32 [#allocation5], 4
      %s31 = int_to_ptr.vmem [resolvable:$true] %s30
      %36 = dma.hbm_to_vmem [thread:$0]  %s1, 512, %s31, [#allocation6], 128, 128, 8
    $region9: #{tpu_custom_call.1} parent=1 // pred_fallthru
      _
    // Predicated region
    $region10: #{tpu_custom_call.1} parent=1 // pred_check
      _
    $region11: #{tpu_custom_call.1} parent=1 // pred_check_branch
      %38 = sbr.rel (0) target = $region13
    $region12: #{tpu_custom_call.1} parent=1 // pred_region
      _
    $region13: #{tpu_custom_call.1} parent=1 // pred_fallthru
      _
    // Predicated region
    $region14: #{tpu_custom_call.1} parent=1 // pred_check
      _
    $region15: #{tpu_custom_call.1} parent=1 // pred_check_branch
      %40 = sbr.rel (0) target = $region17
    $region16: #{tpu_custom_call.1} parent=1 // pred_region
      %s42 = ssub.s32 1024, 1024
      %43 = vsyncadd [#allocation6], %s42
      %s44 = sshll.u32 [#allocation7], 4
      %s45 = int_to_ptr.vmem [resolvable:$true] %s44
      %50 = dma.hbm_to_vmem [thread:$0]  %s3, 1024, %s45, [#allocation6], 64, 64, 4
    $region17: #{tpu_custom_call.1} parent=1 // pred_fallthru
      _
    // Predicated region
    $region18: #{tpu_custom_call.1} parent=1 // pred_check
      _
    $region19: #{tpu_custom_call.1} parent=1 // pred_check_branch
      %52 = sbr.rel (0) target = $region21
    $region20: #{tpu_custom_call.1} parent=1 // pred_region
      _
    $region21: #{tpu_custom_call.1} parent=1 // pred_fallthru
      _
    // Predicated region
    $region22: #{tpu_custom_call.1} parent=1 // pred_check
      _
    $region23: #{tpu_custom_call.1} parent=1 // pred_check_branch
      %54 = sbr.rel (0) target = $region25
    $region24: #{tpu_custom_call.1} parent=1 // pred_region
      %55 = dma.done [#allocation3], 128
    $region25: #{tpu_custom_call.1} parent=1 // pred_fallthru
      _
    // Predicated region
    $region26: #{tpu_custom_call.1} parent=1 // pred_check
      _
    $region27: #{tpu_custom_call.1} parent=1 // pred_check_branch
      %57 = sbr.rel (0) target = $region29
    $region28: #{tpu_custom_call.1} parent=1 // pred_region
      %58 = dma.done [#allocation6], 512
    $region29: #{tpu_custom_call.1} parent=1 // pred_fallthru
      _
    // Predicated region
    $region30: #{tpu_custom_call.1} parent=1 // pred_check
      _
    $region31: #{tpu_custom_call.1} parent=1 // pred_check_branch
      %60 = sbr.rel (0) target = $region33
    $region32: #{tpu_custom_call.1} parent=1 // pred_region
      %61 = dma.done [#allocation6], 1024
    $region33: #{tpu_custom_call.1} parent=1 // pred_fallthru
      _
    %p63 = scmp.eq.s32.totalorder 0, 0
    // Predicated region
    $region34: #{tpu_custom_call.1} parent=1 // pred_check
      %p64 = pneg %p63
    $region35: #{tpu_custom_call.1} parent=1 // pred_check_branch
      %66 = sbr.rel (%p64) target = $region37
    $region36: #{tpu_custom_call.1} parent=1 // pred_region
      %v67 = vld [vmem:[%s4] sm:$0x1]
      %v69 = vlaneseq
      %v70 = vshrl.u32 %v69, 7
      %v71 = vsub.s32 0, %v70
      %v72 = vrot.slane %v67, %v71
      %74 = vst [vmem:[#allocation8] sm:$0xff] %v72
      %75 = vst [vmem:[#allocation8 + $0x8] sm:$0xff] %v72
    $region37: #{tpu_custom_call.1} parent=1 // pred_fallthru
      _
    %v76 = vld [vmem:[#allocation2] sm:$0xf]
    %v77 = vld [vmem:[#allocation2 + $0x4] sm:$0xf]
    %v78 = vld [vmem:[#allocation5] sm:$0xff]
    %v79 = vld [vmem:[#allocation5 + $0x8] sm:$0xff]
    %v80 = vld [vmem:[#allocation5 + $0x10] sm:$0xff]
    %v81 = vld [vmem:[#allocation5 + $0x18] sm:$0xff]
    %v82 = vld [vmem:[%s2] sm:$0x3]
    %v84 = vlaneseq
    %v85 = vshrl.u32 %v84, 7
    %v86 = vsub.s32 0, %v85
    %v87 = vrot.slane %v82, %v86
    %v88 = vlaneseq
    %v89 = vshrl.u32 %v88, 7
    %v90 = vsub.s32 1, %v89
    %v91 = vrot.slane %v82, %v90
    %v96 = vunpack.c.l.b16 %v76
    %v97 = vunpack.c.l.b16 %v77
    %v98 = vpack.c.b16 %v97, %v96
    %v103 = vunpack.c.l.b16 %v78
    %v104 = vunpack.c.h.b16 %v78
    %v105 = vunpack.c.l.b16 %v79
    %v106 = vunpack.c.h.b16 %v79
    %v107 = vunpack.c.l.b16 %v80
    %v108 = vunpack.c.h.b16 %v80
    %v109 = vunpack.c.l.b16 %v81
    %v110 = vunpack.c.h.b16 %v81
    %v111 = vpack.c.b16 %v105, %v103
    %v112 = vpack.c.b16 %v106, %v104
    %v113 = vpack.c.b16 %v109, %v107
    %v114 = vpack.c.b16 %v110, %v108
    %vm119 = vcmask 261120
    %v121 = vsel %vm119, %v98, 0
    %123 = vmatprep.subr.bf16.mxu0 %v112
    %124 = vmatpush1.bf16.msra.mxu0 %v111
    %125 = vmatprep.subr.bf16.mxu0 %v114
    %126 = vmatpush1.bf16.msra.mxu0 %v113
    %127 = vmatprep.subr.bf16.mxu0 0
    %128 = vmatpush1.bf16.msra.mxu0 0
    %129 = vmatprep.subr.bf16.mxu0 0
    %130 = vmatpush1.bf16.msra.mxu0 0
    %131 = vmatprep.subr.bf16.mxu0 0
    %132 = vmatpush1.bf16.msra.mxu0 0
    %133 = vmatprep.subr.bf16.mxu0 0
    %134 = vmatpush1.bf16.msra.mxu0 0
    %135 = vmatprep.subr.bf16.mxu0 0
    %136 = vmatpush1.bf16.msra.mxu0 0
    %137 = vmatprep.subr.bf16.mxu0 0
    %138 = vmatpush1.bf16.msra.mxu0 0
    %139 = vmatprep.subr.bf16.mxu0 0
    %140 = vmatpush1.bf16.msra.mxu0 0
    %141 = vmatprep.subr.bf16.mxu0 0
    %142 = vmatpush1.bf16.msra.mxu0 0
    %143 = vmatprep.subr.bf16.mxu0 0
    %144 = vmatpush1.bf16.msra.mxu0 0
    %145 = vmatprep.subr.bf16.mxu0 0
    %146 = vmatpush1.bf16.msra.mxu0 0
    %147 = vmatprep.subr.bf16.mxu0 0
    %148 = vmatpush1.bf16.msra.mxu0 0
    %149 = vmatprep.subr.bf16.mxu0 0
    %150 = vmatpush1.bf16.msra.mxu0 0
    %151 = vmatprep.subr.bf16.mxu0 0
    %152 = vmatpush1.bf16.msra.mxu0 0
    %153 = vmatprep.subr.bf16.mxu0 0
    %154 = vmatpush1.bf16.msra.mxu0 0
    %155 = vmatprep.mubr.bf16.mxu0 0
    %156 = vmatmul.mubr.bf16.gmra.mrb[0].mxu0 %v121
    %v157 = vpop.f32.mrb[0].mxu0
    %v158 = vadd.f32 %v87, %v157
    %v159 = vpop.f32.mrb[0].mxu0
    %v160 = vadd.f32 %v91, %v159
    %v161 = vpop.f32.mrb[0].mxu0
    %v162 = vadd.f32 %v87, %v161
    %v163 = vpop.f32.mrb[0].mxu0
    %v164 = vadd.f32 %v91, %v163
    %165 = vdwg.mxu0
    %v166 = vmul.f32 %v158, 0.5
    %v167 = vmul.f32 %v162, 0.5
    %v168 = vmul.f32 %v158, 0.044715
    %v169 = vmul.f32 %v162, 0.044715
    %v170 = vmul.f32 %v168, %v158
    %v171 = vmul.f32 %v169, %v162
    %v172 = vmul.f32 %v170, %v158
    %v173 = vmul.f32 %v171, %v162
    %v174 = vadd.f32 %v158, %v172
    %v175 = vadd.f32 %v162, %v173
    %v176 = vmul.f32 %v174, 0.7978846
    %v177 = vmul.f32 %v175, 0.7978846
    %v178 = vtanh.pop %v176
    %v179 = vtanh.pop %v177
    %v180 = vadd.f32 %v178, 1.0
    %v181 = vadd.f32 %v179, 1.0
    %v182 = vmul.f32 %v166, %v180
    %v183 = vmul.f32 %v167, %v181
    %v184 = vmul.f32 %v182, %v160
    %v185 = vmul.f32 %v183, %v164
    %v186 = vld [vmem:[#allocation8] sm:$0xff]
    %v187 = vld [vmem:[#allocation8 + $0x8] sm:$0xff]
    %v188 = vpack.c.bf16 %v185, %v184
    %v189 = vld [vmem:[#allocation7] sm:$0xf]
    %v190 = vld [vmem:[#allocation7 + $0x4] sm:$0xf]
    %v191 = vld [vmem:[#allocation7 + $0x8] sm:$0xf]
    %v192 = vld [vmem:[#allocation7 + $0xc] sm:$0xf]
    %v193 = vld [vmem:[#allocation7 + $0x10] sm:$0xf]
    %v194 = vld [vmem:[#allocation7 + $0x14] sm:$0xf]
    %v195 = vld [vmem:[#allocation7 + $0x18] sm:$0xf]
    %v196 = vld [vmem:[#allocation7 + $0x1c] sm:$0xf]
    %v197 = vld [vmem:[#allocation7 + $0x20] sm:$0xf]
    %v198 = vld [vmem:[#allocation7 + $0x24] sm:$0xf]
    %v199 = vld [vmem:[#allocation7 + $0x28] sm:$0xf]
    %v200 = vld [vmem:[#allocation7 + $0x2c] sm:$0xf]
    %v201 = vld [vmem:[#allocation7 + $0x30] sm:$0xf]
    %v202 = vld [vmem:[#allocation7 + $0x34] sm:$0xf]
    %v203 = vld [vmem:[#allocation7 + $0x38] sm:$0xf]
    %v204 = vld [vmem:[#allocation7 + $0x3c] sm:$0xf]
    %v221 = vunpack.c.l.b16 %v189
    %v222 = vunpack.c.l.b16 %v190
    %v223 = vunpack.c.l.b16 %v191
    %v224 = vunpack.c.l.b16 %v192
    %v225 = vunpack.c.l.b16 %v193
    %v226 = vunpack.c.l.b16 %v194
    %v227 = vunpack.c.l.b16 %v195
    %v228 = vunpack.c.l.b16 %v196
    %v229 = vunpack.c.l.b16 %v197
    %v230 = vunpack.c.l.b16 %v198
    %v231 = vunpack.c.l.b16 %v199
    %v232 = vunpack.c.l.b16 %v200
    %v233 = vunpack.c.l.b16 %v201
    %v234 = vunpack.c.l.b16 %v202
    %v235 = vunpack.c.l.b16 %v203
    %v236 = vunpack.c.l.b16 %v204
    %v237 = vpack.c.b16 %v222, %v221
    %v238 = vpack.c.b16 %v224, %v223
    %v239 = vpack.c.b16 %v226, %v225
    %v240 = vpack.c.b16 %v228, %v227
    %v241 = vpack.c.b16 %v230, %v229
    %v242 = vpack.c.b16 %v232, %v231
    %v243 = vpack.c.b16 %v234, %v233
    %v244 = vpack.c.b16 %v236, %v235
    %253 = vmatprep.subr.bf16.mxu0 0
    %254 = vmatpush1.bf16.msra.mxu0 %v237
    %255 = vmatprep.subr.bf16.mxu0 0
    %256 = vmatpush1.bf16.msra.mxu0 %v238
    %257 = vmatprep.subr.bf16.mxu0 0
    %258 = vmatpush1.bf16.msra.mxu0 %v239
    %259 = vmatprep.subr.bf16.mxu0 0
    %260 = vmatpush1.bf16.msra.mxu0 %v240
    %261 = vmatprep.subr.bf16.mxu0 0
    %262 = vmatpush1.bf16.msra.mxu0 %v241
    %263 = vmatprep.subr.bf16.mxu0 0
    %264 = vmatpush1.bf16.msra.mxu0 %v242
    %265 = vmatprep.subr.bf16.mxu0 0
    %266 = vmatpush1.bf16.msra.mxu0 %v243
    %267 = vmatprep.subr.bf16.mxu0 0
    %268 = vmatpush1.bf16.msra.mxu0 %v244
    %269 = vmatprep.subr.bf16.mxu0 0
    %270 = vmatpush1.bf16.msra.mxu0 0
    %271 = vmatprep.subr.bf16.mxu0 0
    %272 = vmatpush1.bf16.msra.mxu0 0
    %273 = vmatprep.subr.bf16.mxu0 0
    %274 = vmatpush1.bf16.msra.mxu0 0
    %275 = vmatprep.subr.bf16.mxu0 0
    %276 = vmatpush1.bf16.msra.mxu0 0
    %277 = vmatprep.subr.bf16.mxu0 0
    %278 = vmatpush1.bf16.msra.mxu0 0
    %279 = vmatprep.subr.bf16.mxu0 0
    %280 = vmatpush1.bf16.msra.mxu0 0
    %281 = vmatprep.subr.bf16.mxu0 0
    %282 = vmatpush1.bf16.msra.mxu0 0
    %283 = vmatprep.subr.bf16.mxu0 0
    %284 = vmatpush1.bf16.msra.mxu0 0
    %285 = vmatprep.mubr.bf16.mxu0 0
    %286 = vmatmul.mubr.bf16.gmra.mrb[0].mxu0 %v188
    %v287 = vpop.f32.mrb[0].mxu0
    %v288 = vadd.f32 0.0, %v287
    %v289 = vpop.f32.mrb[0].mxu0
    %v290 = vpop.f32.mrb[0].mxu0
    %v291 = vadd.f32 0.0, %v290
    %v292 = vpop.f32.mrb[0].mxu0
    %293 = vdwg.mxu0
    %v294 = vadd.f32 %v186, %v288
    %v295 = vadd.f32 %v187, %v291
    %296 = vst [vmem:[#allocation8] sm:$0xff] %v294
    %297 = vst [vmem:[#allocation8 + $0x8] sm:$0xff] %v295
    // Predicated region
    $region38: #{tpu_custom_call.1} parent=1 // pred_check
      _
    $region39: #{tpu_custom_call.1} parent=1 // pred_check_branch
      %299 = sbr.rel (0) target = $region41
    $region40: #{tpu_custom_call.1} parent=1 // pred_region
      %s301 = ssub.s32 256, 256
      %302 = vsyncadd [#allocation4], %s301
      %s303 = sshll.u32 [#allocation8], 4
      %s304 = int_to_ptr.vmem [resolvable:$true] %s303
      %309 = dma.vmem_to_hbm [thread:$0]  %s304, 256, %s5, [#allocation4], 128, 128, 8
    $region41: #{tpu_custom_call.1} parent=1 // pred_fallthru
      _
    // Predicated region
    $region42: #{tpu_custom_call.1} parent=1 // pred_check
      _
    $region43: #{tpu_custom_call.1} parent=1 // pred_check_branch
      %311 = sbr.rel (0) target = $region45
    $region44: #{tpu_custom_call.1} parent=1 // pred_region
      %312 = dma.done [#allocation4], 256
    $region45: #{tpu_custom_call.1} parent=1 // pred_fallthru
      _
    %313 = vsyncpa [#allocation3], 1
    %314 = vsyncpa [#allocation6], 1
    %315 = vsyncpa [#allocation4], 1

</llo_original>
